<compile_context>
chip_gen: v7x
topology: tpu7x:2x2x1
jax: 0.10.0
libtpu: 0.0.40
codegen_flags: <defaults>
</compile_context>

<pallas_src>
import numpy as np

import jax
import jax.numpy as jnp
from jax.experimental import pallas as pl
from jax.experimental.pallas import tpu as pltpu


def _copy_kernel(x_ref, o_ref):
    # The entire forward pass of fMRIDecoder_Z: o = x.
    o_ref[...] = x_ref[...]


_LANES = 128
_SMALL_BLOCK_BYTES = 512 * 1024          # single-block, no-grid path
_TARGET_TILE_BYTES = 8 * 1024 * 1024     # per-buffer tile target (large paths)
_MAX_TILE_BYTES = 8 * 1024 * 1024        # hard cap per buffer
_VMEM_LIMIT_BYTES = 48 * 1024 * 1024     # 4 buffers x 8 MiB = 32 MiB + headroom


def _round_up(v: int, m: int) -> int:
    return -(-v // m) * m


def _round_down_min(v: int, m: int) -> int:
    return max(m, (v // m) * m)


def _large_compiler_params() -> pltpu.CompilerParams:
    return pltpu.CompilerParams(
        dimension_semantics=("parallel",),
        vmem_limit_bytes=_VMEM_LIMIT_BYTES,
    )


def fmri_decoder_z_forward(x: jax.Array, *, donate: bool = False) -> jax.Array:
    """Identity forward of fMRIDecoder_Z as a Pallas TPU copy kernel.

    Pass donate=True only when the caller actually donates `x` (e.g. via
    jax.jit(..., donate_argnums=...)); aliasing without donation makes XLA
    insert a defensive input copy that doubles the cost.  Wrap calls in
    jax.jit so the metadata-only reshapes below stay free.
    """
    n = int(x.size)
    itemsize = int(np.dtype(x.dtype).itemsize)
    nbytes = n * itemsize
    alias = {0: 0} if donate else {}
    cost = pl.CostEstimate(flops=0, transcendentals=0, bytes_accessed=2 * nbytes)
    # Sublane rows per vreg tile: 8 (32-bit), 16 (16-bit), 32 (8-bit).
    packing = 8 * max(1, 4 // itemsize)

    # ---- Tiny inputs: one full-extent block, zero wrapper glue. ------------
    if nbytes <= _SMALL_BLOCK_BYTES:
        return pl.pallas_call(
            _copy_kernel,
            out_shape=jax.ShapeDtypeStruct(x.shape, x.dtype),
            input_output_aliases=alias,
            cost_estimate=cost,
        )(x)

    # ---- Large, 128-aligned size: lane-dense slab, big tiles, no padding. --
    if n % _LANES == 0:
        rows = n // _LANES
        target_rows = _round_down_min(_TARGET_TILE_BYTES // (_LANES * itemsize), packing)
        half_rows = _round_up(_round_up(rows, 2) // 2, packing)  # >= 2 steps for megacore
        tile_rows = min(target_rows, half_rows)
        slab = x.reshape(rows, _LANES)                 # contiguous: free bitcast under jit
        out = pl.pallas_call(
            _copy_kernel,
            out_shape=jax.ShapeDtypeStruct((rows, _LANES), x.dtype),
            grid=(pl.cdiv(rows, tile_rows),),
            in_specs=[pl.BlockSpec((tile_rows, _LANES), lambda i: (i, 0))],
            out_specs=pl.BlockSpec((tile_rows, _LANES), lambda i: (i, 0)),
            input_output_aliases=alias,
            cost_estimate=cost,
            compiler_params=_large_compiler_params(),
        )(slab)
        return out.reshape(x.shape)

    # ---- Large, ragged size, ndim >= 2: block leading axis, trailing full. -
    if x.ndim >= 2:
        d0 = int(x.shape[0])
        mid = 1
        if x.ndim >= 3:
            for d in x.shape[1:-2]:
                mid *= int(d)
            pad_sub = _round_up(int(x.shape[-2]), packing)
        else:
            pad_sub = 1  # ndim == 2: the blocked leading dim is the sublane dim
        pad_lane = _round_up(int(x.shape[-1]), _LANES)
        # VMEM footprint (after (sublane, lane) padding) of one leading row.
        row_bytes = mid * pad_sub * pad_lane * itemsize
        lead_ok = row_bytes <= _MAX_TILE_BYTES and (x.ndim >= 3 or d0 >= packing)
        if lead_ok:
            b0 = max(1, min(d0, _TARGET_TILE_BYTES // row_bytes))
            if d0 >= 2:
                b0 = min(b0, _round_up(d0, 2) // 2)    # >= 2 steps for megacore
            if x.ndim == 2:
                b0 = _round_down_min(b0, packing)      # sublane granularity
            block = (b0,) + tuple(int(d) for d in x.shape[1:])
            zeros = (0,) * (x.ndim - 1)
            index_map = lambda i: (i,) + zeros
            return pl.pallas_call(
                _copy_kernel,
                out_shape=jax.ShapeDtypeStruct(x.shape, x.dtype),
                grid=(pl.cdiv(d0, b0),),
                in_specs=[pl.BlockSpec(block, index_map)],
                out_specs=pl.BlockSpec(block, index_map),
                input_output_aliases=alias,
                cost_estimate=cost,
                compiler_params=_large_compiler_params(),
            )(x)

    # ---- Last-resort fallback (e.g. huge ragged 1-D, huge trailing slabs). -
    # TODO(synk): replace with a direct HBM->HBM pltpu.make_async_copy path so
    # even these rare shapes avoid the pad + slice round-trips.
    rows = _round_up(-(-n // _LANES), packing)
    flat = jnp.pad(x.reshape(-1), (0, rows * _LANES - n))
    target_rows = _round_down_min(_TARGET_TILE_BYTES // (_LANES * itemsize), packing)
    half_rows = _round_up(_round_up(rows, 2) // 2, packing)
    tile_rows = min(target_rows, half_rows)
    out = pl.pallas_call(
        _copy_kernel,
        out_shape=jax.ShapeDtypeStruct((rows, _LANES), x.dtype),
        grid=(pl.cdiv(rows, tile_rows),),
        in_specs=[pl.BlockSpec((tile_rows, _LANES), lambda i: (i, 0))],
        out_specs=pl.BlockSpec((tile_rows, _LANES), lambda i: (i, 0)),
        cost_estimate=cost,
        compiler_params=_large_compiler_params(),
    )(flat.reshape(rows, _LANES))
    return out.reshape(-1)[:n].reshape(x.shape)


if __name__ == "__main__":
    fwd = jax.jit(fmri_decoder_z_forward)
    key = jax.random.PRNGKey(0)
    k1, k2, k3 = jax.random.split(key, 3)

    # Spec case: NCHW fMRI-like input -> tiny single-block path.
    x1 = jax.random.normal(k1, (2, 4, 16, 16), dtype=jnp.float32)
    # 128-aligned total size (~1.5 MiB) -> lane-dense slab path, 2 parallel tiles.
    x2 = jax.random.normal(k2, (96, 32, 129), dtype=jnp.float32)
    # Ragged total size (~0.8 MiB) -> leading-axis blocks, trailing dims full.
    x3 = jax.random.normal(k3, (48, 17, 259), dtype=jnp.float32)

    for x in (x1, x2, x3):
        x_host = np.asarray(x)
        y = jax.block_until_ready(fwd(x))
        assert y.shape == x.shape and y.dtype == x.dtype
        assert np.array_equal(np.asarray(y), x_host)

    print("KERNEL_OK")
</pallas_src>

<mosaic_0001>
module attributes {stable_mosaic.version = 11 : i64} {
  func.func @_copy_kernel(%arg0: memref<2x4x16x16xf32, #tpu.memory_space<vmem>>, %arg1: memref<2x4x16x16xf32, #tpu.memory_space<vmem>>) attributes {dimension_semantics = [], scalar_prefetch = 0 : i64, scratch_operands = 0 : i64, tpu.core_type = #tpu.core_type<tc>} {
    %c0 = arith.constant 0 : index
    %c0_0 = arith.constant 0 : index
    %c0_1 = arith.constant 0 : index
    %c0_2 = arith.constant 0 : index
    %0 = vector.load %arg0[%c0, %c0_0, %c0_1, %c0_2] : memref<2x4x16x16xf32, #tpu.memory_space<vmem>>, vector<2x4x16x16xf32>
    %c0_3 = arith.constant 0 : index
    %c0_4 = arith.constant 0 : index
    %c0_5 = arith.constant 0 : index
    %c0_6 = arith.constant 0 : index
    %1 = vector.load %arg1[%c0_3, %c0_4, %c0_5, %c0_6] : memref<2x4x16x16xf32, #tpu.memory_space<vmem>>, vector<2x4x16x16xf32>
    tpu.vector_store %arg1[%c0_3, %c0_4, %c0_5, %c0_6], %0 {strides = array<i32>} : memref<2x4x16x16xf32, #tpu.memory_space<vmem>>, vector<2x4x16x16xf32>,
    return
  }
}

</mosaic_0001>

<llo_original>
// kernel: fmri_decoder_z_forward.1
$region0: #{fmri_decoder_z_forward.1}
  #allocation0 [shape = 'u32[]', space=smem, size = 0x4, offset = 0x4, fixed_abs, tag = 'smem constant byte address 0x4 - core index']
  #allocation1 [shape = 'u32[144,128]{1,0:T(1,128)}', space=vmem, size = 0x12000, scoped, tag = 'internal scratch']
  %s0 = inlined_call_operand.hbm [shape: f32[2,4,16,16], index: 0, kind: input, shape index: {}]
  %s1 = inlined_call_operand.hbm [shape: f32[2,4,16,16], index: 1, kind: output, shape index: {}]
  %s2 = sld [smem:[#allocation0]]
  $region18: #{fmri_decoder_z_forward.1} parent=0
    _
  %s4 = ssub.s32 1, %s2
  %s5 = scalar_select 0, %s4, %s2
  $region1: #{fmri_decoder_z_forward.1} parent=0
    #allocation2 [shape = 'u8[65536]{0}', space=vmem, size = 0x10000, scoped, tag = 'input window, operand 0, single buffered']
    #allocation3 [shape = 's32[1]{0}', space=sflag, size = 0x4, scoped, tag = 'scoped memory for fmri_decoder_z_forward.1']
    #allocation4 [shape = 's32[1]{0}', space=sflag, size = 0x4, scoped, tag = 'scoped memory for fmri_decoder_z_forward.1']
    #allocation5 [shape = 'u8[65536]{0}', space=vmem, size = 0x10000, scoped, tag = 'output window, operand 0, single buffered']
    %6 = vsyncpa [#allocation3], 0
    %7 = vsyncpa [#allocation4], 0
    // Predicated region
    $region2: #{fmri_decoder_z_forward.1} parent=1 // pred_check
      _
    $region3: #{fmri_decoder_z_forward.1} parent=1 // pred_check_branch
      %9 = sbr.rel (0) target = $region5
    $region4: #{fmri_decoder_z_forward.1} parent=1 // pred_region
      %s11 = ssub.s32 2048, 2048
      %12 = vsyncadd [#allocation3], %s11
      %s13 = sshll.u32 [#allocation2], 4
      %s14 = int_to_ptr.vmem [resolvable:$true] %s13
      %19 = dma.hbm_to_vmem [thread:$0]  %s0, 2048, %s14, [#allocation3], 128, 128, 8
    $region5: #{fmri_decoder_z_forward.1} parent=1 // pred_fallthru
      _
    // Predicated region
    $region6: #{fmri_decoder_z_forward.1} parent=1 // pred_check
      _
    $region7: #{fmri_decoder_z_forward.1} parent=1 // pred_check_branch
      %21 = sbr.rel (0) target = $region9
    $region8: #{fmri_decoder_z_forward.1} parent=1 // pred_region
      %22 = dma.done [#allocation3], 2048
    $region9: #{fmri_decoder_z_forward.1} parent=1 // pred_fallthru
      _
    %v23 = vld [vmem:[#allocation2] sm:$0xff]
    %v24 = vld [vmem:[#allocation2 + $0x8] sm:$0xff]
    %v25 = vld [vmem:[#allocation2 + $0x10] sm:$0xff]
    %v26 = vld [vmem:[#allocation2 + $0x18] sm:$0xff]
    %v27 = vld [vmem:[#allocation2 + $0x20] sm:$0xff]
    %v28 = vld [vmem:[#allocation2 + $0x28] sm:$0xff]
    %v29 = vld [vmem:[#allocation2 + $0x30] sm:$0xff]
    %v30 = vld [vmem:[#allocation2 + $0x38] sm:$0xff]
    %v31 = vld [vmem:[#allocation2 + $0x40] sm:$0xff]
    %v32 = vld [vmem:[#allocation2 + $0x48] sm:$0xff]
    %v33 = vld [vmem:[#allocation2 + $0x50] sm:$0xff]
    %v34 = vld [vmem:[#allocation2 + $0x58] sm:$0xff]
    %v35 = vld [vmem:[#allocation2 + $0x60] sm:$0xff]
    %v36 = vld [vmem:[#allocation2 + $0x68] sm:$0xff]
    %v37 = vld [vmem:[#allocation2 + $0x70] sm:$0xff]
    %v38 = vld [vmem:[#allocation2 + $0x78] sm:$0xff]
    %vm39 = vcmask 130048
    %40 = vst.msk [vmem:[#allocation5] sm:$0xff] %vm39, %v23
    %41 = vst.msk [vmem:[#allocation5 + $0x8] sm:$0xff] %vm39, %v24
    %42 = vst.msk [vmem:[#allocation5 + $0x10] sm:$0xff] %vm39, %v25
    %43 = vst.msk [vmem:[#allocation5 + $0x18] sm:$0xff] %vm39, %v26
    %44 = vst.msk [vmem:[#allocation5 + $0x20] sm:$0xff] %vm39, %v27
    %45 = vst.msk [vmem:[#allocation5 + $0x28] sm:$0xff] %vm39, %v28
    %46 = vst.msk [vmem:[#allocation5 + $0x30] sm:$0xff] %vm39, %v29
    %47 = vst.msk [vmem:[#allocation5 + $0x38] sm:$0xff] %vm39, %v30
    %48 = vst.msk [vmem:[#allocation5 + $0x40] sm:$0xff] %vm39, %v31
    %49 = vst.msk [vmem:[#allocation5 + $0x48] sm:$0xff] %vm39, %v32
    %50 = vst.msk [vmem:[#allocation5 + $0x50] sm:$0xff] %vm39, %v33
    %51 = vst.msk [vmem:[#allocation5 + $0x58] sm:$0xff] %vm39, %v34
    %52 = vst.msk [vmem:[#allocation5 + $0x60] sm:$0xff] %vm39, %v35
    %53 = vst.msk [vmem:[#allocation5 + $0x68] sm:$0xff] %vm39, %v36
    %54 = vst.msk [vmem:[#allocation5 + $0x70] sm:$0xff] %vm39, %v37
    %55 = vst.msk [vmem:[#allocation5 + $0x78] sm:$0xff] %vm39, %v38
    // Predicated region
    $region10: #{fmri_decoder_z_forward.1} parent=1 // pred_check
      _
    $region11: #{fmri_decoder_z_forward.1} parent=1 // pred_check_branch
      %57 = sbr.rel (0) target = $region13
    $region12: #{fmri_decoder_z_forward.1} parent=1 // pred_region
      %s59 = ssub.s32 2048, 2048
      %60 = vsyncadd [#allocation4], %s59
      %s61 = sshll.u32 [#allocation5], 4
      %s62 = int_to_ptr.vmem [resolvable:$true] %s61
      %67 = dma.vmem_to_hbm [thread:$0]  %s62, 2048, %s1, [#allocation4], 128, 128, 8
    $region13: #{fmri_decoder_z_forward.1} parent=1 // pred_fallthru
      _
    // Predicated region
    $region14: #{fmri_decoder_z_forward.1} parent=1 // pred_check
      _
    $region15: #{fmri_decoder_z_forward.1} parent=1 // pred_check_branch
      %69 = sbr.rel (0) target = $region17
    $region16: #{fmri_decoder_z_forward.1} parent=1 // pred_region
      %70 = dma.done [#allocation4], 2048
    $region17: #{fmri_decoder_z_forward.1} parent=1 // pred_fallthru
      _
    %71 = vsyncpa [#allocation3], 1
    %72 = vsyncpa [#allocation4], 1

</llo_original>
